<compile_context>
chip_gen: v6e
topology: v6e:2x2x1
jax: 0.10.0
libtpu: 0.0.40
codegen_flags: <defaults>
</compile_context>

<pallas_src>
import functools

import jax
import jax.numpy as jnp
from jax import lax
from jax.experimental import pallas as pl
from jax.experimental.pallas import tpu as pltpu

LAMBDA_PARAM = 0.005          # default of the PyTorch module
_EPS = 1e-12                  # F.normalize eps


# ---------------------------------------------------------------------------
# VMEM budget / tile selection helpers
# ---------------------------------------------------------------------------
def _vmem_budget_bytes():
    try:
        cap = int(pltpu.get_tpu_info().vmem_capacity_bytes)
    except Exception:
        cap = 64 * 1024 * 1024            # conservative v7x floor
    # ~25% headroom for compiler scratch / semaphores, cap at ~100 MiB.
    return min(int(cap * 0.75), 100 * 1024 * 1024)


def _divisor_tiles(d, candidates):
    out = [t for t in candidates if t <= d and d % t == 0]
    return out or [d]


def _pick_feature_tile(n, d, per_elem_bytes, budget):
    # Passes 1-2 are memory bound; a modest tile is enough (0.35us/step is
    # amortized already at 128-512 wide tiles).
    cands = _divisor_tiles(d, (512, 256, 128))
    for td in cands:
        if n * td * per_elem_bytes <= budget:
            return td
    return cands[-1]


def _pick_corr_tiles(n, d, op_itemsize, budget):
    # Prefer tn == N (single contraction step, A resident across the j sweep,
    # no (td, td) accumulator scratch); td as large as the budget allows.
    cands = _divisor_tiles(d, (2048, 1024, 512, 256, 128))
    for td in cands:
        # 2 operands x 2 pipeline buffers + ~3 f32 (td, td) intermediates.
        if 4 * n * td * op_itemsize + 3 * td * td * 4 <= budget:
            return td, n
    # Fall back: tile the batch axis too (adds an f32 (td, td) accumulator).
    for td in cands:
        for tn in (512, 256, 128, 64, 32, 16, 8):
            if tn < n and n % tn == 0:
                if 4 * tn * td * op_itemsize + 4 * td * td * 4 <= budget:
                    return td, tn
    return cands[-1], n


# ---------------------------------------------------------------------------
# Pass 1: per-row inverse L2 norms of z_a / z_b, accumulated over D tiles.
# ---------------------------------------------------------------------------
def _row_inv_norm_kernel(za_ref, zb_ref, inva_ref, invb_ref):
    k = pl.program_id(0)

    @pl.when(k == 0)
    def _():
        inva_ref[...] = jnp.zeros_like(inva_ref)
        invb_ref[...] = jnp.zeros_like(invb_ref)

    za = za_ref[...].astype(jnp.float32)
    zb = zb_ref[...].astype(jnp.float32)
    inva_ref[...] += jnp.sum(za * za, axis=-1, keepdims=True)
    invb_ref[...] += jnp.sum(zb * zb, axis=-1, keepdims=True)

    @pl.when(k == pl.num_programs(0) - 1)
    def _():
        # F.normalize: x / max(||x||, eps) == x * rsqrt(max(||x||^2, eps^2))
        eps2 = jnp.float32(_EPS) * jnp.float32(_EPS)
        inva_ref[...] = lax.rsqrt(jnp.maximum(inva_ref[...], eps2))
        invb_ref[...] = lax.rsqrt(jnp.maximum(invb_ref[...], eps2))


# ---------------------------------------------------------------------------
# Pass 2: apply the row norm, then standardize each feature column
# (mean / unbiased std over the batch dim). Column stats are local to a tile.
# ---------------------------------------------------------------------------
def _standardize_kernel(za_ref, zb_ref, inva_ref, invb_ref, a_ref, b_ref, *, n):
    inv_n = jnp.float32(1.0 / n)
    inv_nm1 = jnp.float32(1.0 / (n - 1))

    def _std(z_ref, inv_ref, o_ref):
        zn = z_ref[...].astype(jnp.float32) * inv_ref[...]        # (N, td)
        mu = jnp.sum(zn, axis=0, keepdims=True) * inv_n           # (1, td)
        zc = zn - mu
        var = jnp.sum(zc * zc, axis=0, keepdims=True) * inv_nm1   # unbiased
        # NOTE: zero-variance feature -> inf/NaN, same as the torch reference.
        o_ref[...] = (zc * lax.rsqrt(var)).astype(o_ref.dtype)

    _std(za_ref, inva_ref, a_ref)
    _std(zb_ref, invb_ref, b_ref)


# ---------------------------------------------------------------------------
# Pass 3a: correlation with full-depth contraction (tn == N, no accumulator).
# Per-i partial losses -> i axis is megacore-parallel.
# ---------------------------------------------------------------------------
def _corr_loss_fullk_kernel(a_ref, b_ref, loss_ref, *, n, lambda_param):
    i = pl.program_id(0)
    j = pl.program_id(1)

    @pl.when(j == 0)
    def _():
        loss_ref[...] = jnp.zeros_like(loss_ref)

    lam = jnp.float32(lambda_param)
    inv_n = jnp.float32(1.0 / n)
    # (N, td).T @ (N, td) on the MXU; f32 accumulation.
    c = lax.dot_general(a_ref[...], b_ref[...], (((0,), (0,)), ((), ())),
                        preferred_element_type=jnp.float32) * inv_n

    loss_ref[...] += (lam * jnp.sum((c + 1.0) ** 2, keepdims=True)
                      ).reshape(1, 1, 1)

    @pl.when(i == j)
    def _():
        rows = lax.broadcasted_iota(jnp.int32, c.shape, 0)
        cols = lax.broadcasted_iota(jnp.int32, c.shape, 1)
        corr = jnp.where(rows == cols,
                         (c - 1.0) ** 2 - lam * (c + 1.0) ** 2,
                         jnp.float32(0.0))
        loss_ref[...] += jnp.sum(corr, keepdims=True).reshape(1, 1, 1)


# ---------------------------------------------------------------------------
# Pass 3b: batch-tiled correlation (nk > 1) with a (td, td) f32 accumulator.
# ---------------------------------------------------------------------------
def _corr_loss_tiled_kernel(a_ref, b_ref, loss_ref, acc_ref, *, n, lambda_param):
    i = pl.program_id(0)
    j = pl.program_id(1)
    k = pl.program_id(2)
    nk = pl.num_programs(2)

    @pl.when((j == 0) & (k == 0))
    def _():
        loss_ref[...] = jnp.zeros_like(loss_ref)

    @pl.when(k == 0)
    def _():
        acc_ref[...] = jnp.zeros_like(acc_ref)

    acc_ref[...] += lax.dot_general(
        a_ref[...], b_ref[...], (((0,), (0,)), ((), ())),
        preferred_element_type=jnp.float32)

    @pl.when(k == nk - 1)
    def _():
        lam = jnp.float32(lambda_param)
        c = acc_ref[...] * jnp.float32(1.0 / n)
        loss_ref[...] += (lam * jnp.sum((c + 1.0) ** 2, keepdims=True)
                          ).reshape(1, 1, 1)

    @pl.when((k == nk - 1) & (i == j))
    def _():
        lam = jnp.float32(lambda_param)
        c = acc_ref[...] * jnp.float32(1.0 / n)
        rows = lax.broadcasted_iota(jnp.int32, c.shape, 0)
        cols = lax.broadcasted_iota(jnp.int32, c.shape, 1)
        corr = jnp.where(rows == cols,
                         (c - 1.0) ** 2 - lam * (c + 1.0) ** 2,
                         jnp.float32(0.0))
        loss_ref[...] += jnp.sum(corr, keepdims=True).reshape(1, 1, 1)


# ---------------------------------------------------------------------------
# Wrapper
# ---------------------------------------------------------------------------
def barlow_twins_loss(z_a, z_b, lambda_param=LAMBDA_PARAM, *,
                      block_d=None, block_d_corr=None, block_n=None,
                      compute_dtype=jnp.bfloat16):
    assert z_a.shape == z_b.shape and z_a.ndim == 2
    n, d = z_a.shape
    assert n >= 2, "torch.std(dim=0, unbiased=True) needs batch >= 2"

    f32 = jnp.float32
    budget = _vmem_budget_bytes()
    z_item = jnp.dtype(z_a.dtype).itemsize
    op_item = jnp.dtype(compute_dtype).itemsize

    # Pass 1/2 tile (memory-bound, modest); pass-3 tile sized independently.
    td12 = block_d if block_d is not None else _pick_feature_tile(
        n, d, 4 * (z_item + op_item), budget)
    td3, tn = _pick_corr_tiles(n, d, op_item, budget)
    if block_d_corr is not None:
        td3 = block_d_corr
    if block_n is not None:
        tn = block_n
    assert d % td12 == 0 and d % td3 == 0 and n % tn == 0

    nd12 = d // td12
    nd3 = d // td3
    nk = n // tn

    # ---- pass 1: per-row inverse L2 norms ---------------------------------
    inv_a, inv_b = pl.pallas_call(
        _row_inv_norm_kernel,
        out_shape=(jax.ShapeDtypeStruct((n, 1), f32),
                   jax.ShapeDtypeStruct((n, 1), f32)),
        grid=(nd12,),
        in_specs=[pl.BlockSpec((n, td12), lambda k: (0, k)),
                  pl.BlockSpec((n, td12), lambda k: (0, k))],
        out_specs=(pl.BlockSpec((n, 1), lambda k: (0, 0)),
                   pl.BlockSpec((n, 1), lambda k: (0, 0))),
        compiler_params=pltpu.CompilerParams(
            dimension_semantics=("arbitrary",),
            vmem_limit_bytes=budget),
    )(z_a, z_b)

    # ---- pass 2: L2-normalize rows + standardize columns ------------------
    a_std, b_std = pl.pallas_call(
        functools.partial(_standardize_kernel, n=n),
        out_shape=(jax.ShapeDtypeStruct((n, d), compute_dtype),
                   jax.ShapeDtypeStruct((n, d), compute_dtype)),
        grid=(nd12,),
        in_specs=[pl.BlockSpec((n, td12), lambda k: (0, k)),
                  pl.BlockSpec((n, td12), lambda k: (0, k)),
                  pl.BlockSpec((n, 1), lambda k: (0, 0)),
                  pl.BlockSpec((n, 1), lambda k: (0, 0))],
        out_specs=(pl.BlockSpec((n, td12), lambda k: (0, k)),
                   pl.BlockSpec((n, td12), lambda k: (0, k))),
        compiler_params=pltpu.CompilerParams(
            dimension_semantics=("parallel",),
            vmem_limit_bytes=budget),
    )(z_a, z_b, inv_a, inv_b)

    # ---- pass 3: tiled correlation + partial losses ------------------------
    loss_shape = jax.ShapeDtypeStruct((nd3, 1, 1), f32)
    reads = (1 + nd3) if nk == 1 else 2 * nd3
    cost = pl.CostEstimate(flops=2 * n * d * d,
                           transcendentals=0,
                           bytes_accessed=reads * n * d * op_item + nd3 * 4)

    if nk == 1:
        partials = pl.pallas_call(
            functools.partial(_corr_loss_fullk_kernel,
                              n=n, lambda_param=lambda_param),
            out_shape=loss_shape,
            grid=(nd3, nd3),
            in_specs=[pl.BlockSpec((n, td3), lambda i, j: (0, i)),
                      pl.BlockSpec((n, td3), lambda i, j: (0, j))],
            out_specs=pl.BlockSpec((1, 1, 1), lambda i, j: (i, 0, 0)),
            compiler_params=pltpu.CompilerParams(
                # i is megacore-parallel (per-i partial output row);
                # j revisits the same output row -> arbitrary.
                dimension_semantics=("parallel", "arbitrary"),
                vmem_limit_bytes=budget),
            cost_estimate=cost,
        )(a_std, b_std)
    else:
        partials = pl.pallas_call(
            functools.partial(_corr_loss_tiled_kernel,
                              n=n, lambda_param=lambda_param),
            out_shape=loss_shape,
            grid=(nd3, nd3, nk),
            in_specs=[pl.BlockSpec((tn, td3), lambda i, j, k: (k, i)),
                      pl.BlockSpec((tn, td3), lambda i, j, k: (k, j))],
            out_specs=pl.BlockSpec((1, 1, 1), lambda i, j, k: (i, 0, 0)),
            scratch_shapes=[pltpu.VMEM((td3, td3), f32)],
            compiler_params=pltpu.CompilerParams(
                dimension_semantics=("parallel", "arbitrary", "arbitrary"),
                vmem_limit_bytes=budget),
            cost_estimate=cost,
        )(a_std, b_std)

    return jnp.sum(partials)


def _reference_loss(z_a, z_b, lambda_param=LAMBDA_PARAM):
    # Pure-JAX mirror of the PyTorch module (for validation).
    za = z_a / jnp.maximum(jnp.linalg.norm(z_a, axis=-1, keepdims=True), 1e-12)
    zb = z_b / jnp.maximum(jnp.linalg.norm(z_b, axis=-1, keepdims=True), 1e-12)
    a = (za - za.mean(axis=0)) / za.std(axis=0, ddof=1)
    b = (zb - zb.mean(axis=0)) / zb.std(axis=0, ddof=1)
    n = z_a.shape[0]
    c = a.T @ b / n
    eye = jnp.eye(c.shape[0], dtype=bool)
    on_diag = jnp.sum((jnp.diagonal(c) - 1.0) ** 2)
    off_diag = jnp.sum(jnp.where(eye, 0.0, (c + 1.0) ** 2))
    return on_diag + lambda_param * off_diag


if __name__ == "__main__":
    key = jax.random.PRNGKey(0)
    k1, k2 = jax.random.split(key)
    N, D = 16, 256  # batch=16, embedding dim=256
    z_a = jax.random.normal(k1, (N, D), dtype=jnp.float32)
    z_b = jax.random.normal(k2, (N, D), dtype=jnp.float32)

    ref = jax.block_until_ready(_reference_loss(z_a, z_b))

    # 1) default fast path: bf16 MXU operands, auto tiles (tn == N here).
    loss_bf16 = jax.block_until_ready(barlow_twins_loss(z_a, z_b))
    # 2) f32 operands, auto tiles (tight numerical check).
    loss_f32 = jax.block_until_ready(
        barlow_twins_loss(z_a, z_b, compute_dtype=jnp.float32))
    # 3) multi-tile full-depth path (nd3 > 1, per-i partial losses).
    loss_multi = jax.block_until_ready(
        barlow_twins_loss(z_a, z_b, block_d_corr=128))
    # 4) batch-tiled path (nk > 1) with the (td, td) accumulator scratch.
    loss_tiled = jax.block_until_ready(
        barlow_twins_loss(z_a, z_b, block_d=128, block_d_corr=128, block_n=8,
                          compute_dtype=jnp.float32))

    checks = (("bf16", loss_bf16, 1e-2, 1e-1),
              ("f32", loss_f32, 5e-3, 1e-2),
              ("bf16-multi", loss_multi, 1e-2, 1e-1),
              ("f32-tiled", loss_tiled, 5e-3, 1e-2))
    for name, val, rtol, atol in checks:
        assert val.shape == () and bool(jnp.isfinite(val)), name
        assert jnp.allclose(val, ref, rtol=rtol, atol=atol), (name, val, ref)
    print("KERNEL_OK")
</pallas_src>

<mosaic_0001>
module attributes {stable_mosaic.version = 11 : i64} {
  func.func @_row_inv_norm_kernel(%arg0: i32, %arg1: memref<16x256xf32, #tpu.memory_space<vmem>>, %arg2: memref<16x256xf32, #tpu.memory_space<vmem>>, %arg3: memref<16x1xf32, #tpu.memory_space<vmem>>, %arg4: memref<16x1xf32, #tpu.memory_space<vmem>>) attributes {dimension_semantics = [#tpu.dimension_semantics<arbitrary>], iteration_bounds = array<i64: 1>, scalar_prefetch = 0 : i64, scratch_operands = 0 : i64, tpu.core_type = #tpu.core_type<tc>, window_params = [{transform_indices = @transform_0, window_bounds = array<i64: 16, 256>}, {transform_indices = @transform_1, window_bounds = array<i64: 16, 256>}, {pipeline_mode = #tpu.pipeline_mode<synchronous>, transform_indices = @transform_2, window_bounds = array<i64: 16, 1>}, {pipeline_mode = #tpu.pipeline_mode<synchronous>, transform_indices = @transform_3, window_bounds = array<i64: 16, 1>}]} {
    %c0_i32 = arith.constant 0 : i32
    %0 = arith.cmpi eq, %arg0, %c0_i32 : i32
    %1 = arith.extui %0 : i1 to i32
    %c0_i32_0 = arith.constant 0 : i32
    %2 = arith.cmpi ne, %1, %c0_i32_0 : i32
    scf.if %2 {
      %cst_15 = arith.constant 0.000000e+00 : f32
      %20 = vector.broadcast %cst_15 : f32 to vector<16x1xf32>
      %c0_16 = arith.constant 0 : index
      %c0_17 = arith.constant 0 : index
      %21 = vector.load %arg3[%c0_16, %c0_17] : memref<16x1xf32, #tpu.memory_space<vmem>>, vector<16x1xf32>
      tpu.vector_store %arg3[%c0_16, %c0_17], %20 {strides = array<i32>} : memref<16x1xf32, #tpu.memory_space<vmem>>, vector<16x1xf32>,
      %cst_18 = arith.constant 0.000000e+00 : f32
      %22 = vector.broadcast %cst_18 : f32 to vector<16x1xf32>
      %c0_19 = arith.constant 0 : index
      %c0_20 = arith.constant 0 : index
      %23 = vector.load %arg4[%c0_19, %c0_20] : memref<16x1xf32, #tpu.memory_space<vmem>>, vector<16x1xf32>
      tpu.vector_store %arg4[%c0_19, %c0_20], %22 {strides = array<i32>} : memref<16x1xf32, #tpu.memory_space<vmem>>, vector<16x1xf32>,
    } else {
    }
    %c0 = arith.constant 0 : index
    %c0_1 = arith.constant 0 : index
    %3 = vector.load %arg1[%c0, %c0_1] : memref<16x256xf32, #tpu.memory_space<vmem>>, vector<16x256xf32>
    %c0_2 = arith.constant 0 : index
    %c0_3 = arith.constant 0 : index
    %4 = vector.load %arg2[%c0_2, %c0_3] : memref<16x256xf32, #tpu.memory_space<vmem>>, vector<16x256xf32>
    %c0_4 = arith.constant 0 : index
    %c0_5 = arith.constant 0 : index
    %5 = vector.load %arg3[%c0_4, %c0_5] : memref<16x1xf32, #tpu.memory_space<vmem>>, vector<16x1xf32>
    %6 = arith.mulf %3, %3 : vector<16x256xf32>
    %cst = arith.constant dense<0.000000e+00> : vector<16xf32>
    %7 = vector.multi_reduction <add>, %6, %cst [1] : vector<16x256xf32> to vector<16xf32>
    %8 = vector.shape_cast %7 : vector<16xf32> to vector<16x1xf32>
    %9 = arith.addf %5, %8 : vector<16x1xf32>
    %c0_6 = arith.constant 0 : index
    %c0_7 = arith.constant 0 : index
    %10 = vector.load %arg3[%c0_6, %c0_7] : memref<16x1xf32, #tpu.memory_space<vmem>>, vector<16x1xf32>
    tpu.vector_store %arg3[%c0_6, %c0_7], %9 {strides = array<i32>} : memref<16x1xf32, #tpu.memory_space<vmem>>, vector<16x1xf32>,
    %c0_8 = arith.constant 0 : index
    %c0_9 = arith.constant 0 : index
    %11 = vector.load %arg4[%c0_8, %c0_9] : memref<16x1xf32, #tpu.memory_space<vmem>>, vector<16x1xf32>
    %12 = arith.mulf %4, %4 : vector<16x256xf32>
    %cst_10 = arith.constant dense<0.000000e+00> : vector<16xf32>
    %13 = vector.multi_reduction <add>, %12, %cst_10 [1] : vector<16x256xf32> to vector<16xf32>
    %14 = vector.shape_cast %13 : vector<16xf32> to vector<16x1xf32>
    %15 = arith.addf %11, %14 : vector<16x1xf32>
    %c0_11 = arith.constant 0 : index
    %c0_12 = arith.constant 0 : index
    %16 = vector.load %arg4[%c0_11, %c0_12] : memref<16x1xf32, #tpu.memory_space<vmem>>, vector<16x1xf32>
    tpu.vector_store %arg4[%c0_11, %c0_12], %15 {strides = array<i32>} : memref<16x1xf32, #tpu.memory_space<vmem>>, vector<16x1xf32>,
    %c0_i32_13 = arith.constant 0 : i32
    %17 = arith.cmpi eq, %arg0, %c0_i32_13 : i32
    %18 = arith.extui %17 : i1 to i32
    %c0_i32_14 = arith.constant 0 : i32
    %19 = arith.cmpi ne, %18, %c0_i32_14 : i32
    scf.if %19 {
      %cst_15 = arith.constant 9.99999996E-13 : f32
      %cst_16 = arith.constant 9.99999996E-13 : f32
      %20 = arith.mulf %cst_15, %cst_16 : f32
      %c0_17 = arith.constant 0 : index
      %c0_18 = arith.constant 0 : index
      %21 = vector.load %arg3[%c0_17, %c0_18] : memref<16x1xf32, #tpu.memory_space<vmem>>, vector<16x1xf32>
      %22 = vector.broadcast %20 : f32 to vector<16x1xf32>
      %23 = arith.maximumf %21, %22 : vector<16x1xf32>
      %24 = math.rsqrt %23 : vector<16x1xf32>
      %c0_19 = arith.constant 0 : index
      %c0_20 = arith.constant 0 : index
      %25 = vector.load %arg3[%c0_19, %c0_20] : memref<16x1xf32, #tpu.memory_space<vmem>>, vector<16x1xf32>
      tpu.vector_store %arg3[%c0_19, %c0_20], %24 {strides = array<i32>} : memref<16x1xf32, #tpu.memory_space<vmem>>, vector<16x1xf32>,
      %c0_21 = arith.constant 0 : index
      %c0_22 = arith.constant 0 : index
      %26 = vector.load %arg4[%c0_21, %c0_22] : memref<16x1xf32, #tpu.memory_space<vmem>>, vector<16x1xf32>
      %27 = vector.broadcast %20 : f32 to vector<16x1xf32>
      %28 = arith.maximumf %26, %27 : vector<16x1xf32>
      %29 = math.rsqrt %28 : vector<16x1xf32>
      %c0_23 = arith.constant 0 : index
      %c0_24 = arith.constant 0 : index
      %30 = vector.load %arg4[%c0_23, %c0_24] : memref<16x1xf32, #tpu.memory_space<vmem>>, vector<16x1xf32>
      tpu.vector_store %arg4[%c0_23, %c0_24], %29 {strides = array<i32>} : memref<16x1xf32, #tpu.memory_space<vmem>>, vector<16x1xf32>,
    } else {
    }
    return
  }
  func.func @transform_0(%arg0: i32) -> (i32, i32) {
    %c0_i32 = arith.constant 0 : i32
    %c0_i32_0 = arith.constant 0 : i32
    return %c0_i32, %arg0 : i32, i32
  }
  func.func @transform_1(%arg0: i32) -> (i32, i32) {
    %c0_i32 = arith.constant 0 : i32
    %c0_i32_0 = arith.constant 0 : i32
    return %c0_i32, %arg0 : i32, i32
  }
  func.func @transform_2(%arg0: i32) -> (i32, i32) {
    %c0_i32 = arith.constant 0 : i32
    %c0_i32_0 = arith.constant 0 : i32
    %c0_i32_1 = arith.constant 0 : i32
    return %c0_i32, %c0_i32_0 : i32, i32
  }
  func.func @transform_3(%arg0: i32) -> (i32, i32) {
    %c0_i32 = arith.constant 0 : i32
    %c0_i32_0 = arith.constant 0 : i32
    %c0_i32_1 = arith.constant 0 : i32
    return %c0_i32, %c0_i32_0 : i32, i32
  }
}

</mosaic_0001>

<llo_original>
// kernel: tpu_custom_call.1
$region0: #{tpu_custom_call.1}
  #allocation0 [shape = 'u32[]', space=smem, size = 0x4, offset = 0x4, fixed_abs, tag = 'smem constant byte address 0x4 - core index']
  #allocation1 [shape = 'u32[144,128]{1,0:T(1,128)}', space=vmem, size = 0x12000, scoped, tag = 'internal scratch']
  %s0 = inlined_call_operand.hbm [shape: f32[16,256], index: 0, kind: input, shape index: {}]
  %s1 = inlined_call_operand.hbm [shape: f32[16,256], index: 1, kind: input, shape index: {}]
  %s2 = inlined_call_operand.vmem [shape: f32[16,1], index: 2, kind: output, shape index: {0}]
  %s3 = inlined_call_operand.vmem [shape: f32[16,1], index: 3, kind: output, shape index: {1}]
  %4 = xla_tuple %s2, %s3
  %s5 = sld [smem:[#allocation0]]
  $region42: #{tpu_custom_call.1} parent=0
    _
  %s7 = ssub.s32 1, %s5
  %s8 = scalar_select 0, %s7, %s5
  $region1: #{tpu_custom_call.1} parent=0
    #allocation2 [shape = 'u8[16384]{0}', space=vmem, size = 0x4000, scoped, tag = 'input window, operand 0, single buffered']
    #allocation3 [shape = 's32[1]{0}', space=sflag, size = 0x4, scoped, tag = 'scoped memory for tpu_custom_call.1']
    #allocation4 [shape = 'u8[16384]{0}', space=vmem, size = 0x4000, scoped, tag = 'input window, operand 1, single buffered']
    #allocation5 [shape = 's32[1]{0}', space=sflag, size = 0x4, scoped, tag = 'scoped memory for tpu_custom_call.1']
    %9 = vsyncpa [#allocation3], 0
    %10 = vsyncpa [#allocation5], 0
    // Predicated region
    $region2: #{tpu_custom_call.1} parent=1 // pred_check
      _
    $region3: #{tpu_custom_call.1} parent=1 // pred_check_branch
      %12 = sbr.rel (0) target = $region5
    $region4: #{tpu_custom_call.1} parent=1 // pred_region
      %s14 = ssub.s32 512, 512
      %15 = vsyncadd [#allocation3], %s14
      %s16 = sshll.u32 [#allocation2], 4
      %s17 = int_to_ptr.vmem [resolvable:$true] %s16
      %22 = dma.hbm_to_vmem [thread:$0]  %s0, 512, %s17, [#allocation3], 256, 256, 16
    $region5: #{tpu_custom_call.1} parent=1 // pred_fallthru
      _
    // Predicated region
    $region6: #{tpu_custom_call.1} parent=1 // pred_check
      _
    $region7: #{tpu_custom_call.1} parent=1 // pred_check_branch
      %24 = sbr.rel (0) target = $region9
    $region8: #{tpu_custom_call.1} parent=1 // pred_region
      %s26 = ssub.s32 512, 512
      %27 = vsyncadd [#allocation5], %s26
      %s28 = sshll.u32 [#allocation4], 4
      %s29 = int_to_ptr.vmem [resolvable:$true] %s28
      %34 = dma.hbm_to_vmem [thread:$0]  %s1, 512, %s29, [#allocation5], 256, 256, 16
    $region9: #{tpu_custom_call.1} parent=1 // pred_fallthru
      _
    // Predicated region
    $region10: #{tpu_custom_call.1} parent=1 // pred_check
      _
    $region11: #{tpu_custom_call.1} parent=1 // pred_check_branch
      %36 = sbr.rel (0) target = $region13
    $region12: #{tpu_custom_call.1} parent=1 // pred_region
      %37 = dma.done [#allocation3], 512
    $region13: #{tpu_custom_call.1} parent=1 // pred_fallthru
      _
    // Predicated region
    $region14: #{tpu_custom_call.1} parent=1 // pred_check
      _
    $region15: #{tpu_custom_call.1} parent=1 // pred_check_branch
      %39 = sbr.rel (0) target = $region17
    $region16: #{tpu_custom_call.1} parent=1 // pred_region
      %40 = dma.done [#allocation5], 512
    $region17: #{tpu_custom_call.1} parent=1 // pred_fallthru
      _
    %p41 = scmp.eq.s32.totalorder 0, 0
    // Predicated region
    $region18: #{tpu_custom_call.1} parent=1 // pred_check
      %p42 = pneg %p41
    $region19: #{tpu_custom_call.1} parent=1 // pred_check_branch
      %44 = sbr.rel (%p42) target = $region21
    $region20: #{tpu_custom_call.1} parent=1 // pred_region
      %vm45 = vcmask 7168
      %46 = vst.msk [vmem:[%s2] sm:$0xff] %vm45, 0.0
      %47 = vst.msk [vmem:[%s2 + $0x8] sm:$0xff] %vm45, 0.0
      %48 = vst.msk [vmem:[%s3] sm:$0xff] %vm45, 0.0
      %49 = vst.msk [vmem:[%s3 + $0x8] sm:$0xff] %vm45, 0.0
    $region21: #{tpu_custom_call.1} parent=1 // pred_fallthru
      _
    %v50 = vld [vmem:[#allocation2] sm:$0xff]
    %v51 = vld [vmem:[#allocation2 + $0x8] sm:$0xff]
    %v52 = vld [vmem:[#allocation2 + $0x10] sm:$0xff]
    %v53 = vld [vmem:[#allocation2 + $0x18] sm:$0xff]
    %v54 = vld [vmem:[#allocation4] sm:$0xff]
    %v55 = vld [vmem:[#allocation4 + $0x8] sm:$0xff]
    %v56 = vld [vmem:[#allocation4 + $0x10] sm:$0xff]
    %v57 = vld [vmem:[#allocation4 + $0x18] sm:$0xff]
    %v58 = vld [vmem:[%s2] sm:$0xff]
    %v59 = vld [vmem:[%s2 + $0x8] sm:$0xff]
    %v60 = vmul.f32 %v50, %v50
    %v61 = vmul.f32 %v51, %v51
    %v62 = vmul.f32 %v52, %v52
    %v63 = vmul.f32 %v53, %v53
    %v64 = vadd.f32 %v60, %v61
    %65 = vadd.xlane.f32.xlu0 %v64
    %v66 = vpop.xlane.xlu0 %65
    %v67 = vadd.f32 %v62, %v63
    %68 = vadd.xlane.f32.xlu0 %v67
    %v69 = vpop.xlane.xlu0 %68
    %v70 = vadd.f32 %v58, %v66
    %v71 = vadd.f32 %v59, %v69
    %vm72 = vcmask 7168
    %73 = vst.msk [vmem:[%s2] sm:$0xff] %vm72, %v70
    %74 = vst.msk [vmem:[%s2 + $0x8] sm:$0xff] %vm72, %v71
    %v75 = vld [vmem:[%s3] sm:$0xff]
    %v76 = vld [vmem:[%s3 + $0x8] sm:$0xff]
    %v77 = vmul.f32 %v54, %v54
    %v78 = vmul.f32 %v55, %v55
    %v79 = vmul.f32 %v56, %v56
    %v80 = vmul.f32 %v57, %v57
    %v81 = vadd.f32 %v77, %v78
    %82 = vadd.xlane.f32.xlu0 %v81
    %v83 = vpop.xlane.xlu0 %82
    %v84 = vadd.f32 %v79, %v80
    %85 = vadd.xlane.f32.xlu0 %v84
    %v86 = vpop.xlane.xlu0 %85
    %v87 = vadd.f32 %v75, %v83
    %v88 = vadd.f32 %v76, %v86
    %89 = vst.msk [vmem:[%s3] sm:$0xff] %vm72, %v87
    %90 = vst.msk [vmem:[%s3 + $0x8] sm:$0xff] %vm72, %v88
    // Predicated region
    $region22: #{tpu_custom_call.1} parent=1 // pred_check
      %p91 = pneg %p41
    $region23: #{tpu_custom_call.1} parent=1 // pred_check_branch
      %93 = sbr.rel (%p91) target = $region25
    $region24: #{tpu_custom_call.1} parent=1 // pred_region
      %v94 = vld [vmem:[%s2] sm:$0xff]
      %v95 = vld [vmem:[%s2 + $0x8] sm:$0xff]
      %v96 = vmax.f32 %v94, 1e-24
      %v97 = vmax.f32 %v95, 1e-24
      %v98 = vrsqrt.pop %v96
      %v99 = vrsqrt.pop %v97
      %100 = vst.msk [vmem:[%s2] sm:$0xff] %vm72, %v98
      %101 = vst.msk [vmem:[%s2 + $0x8] sm:$0xff] %vm72, %v99
      %v102 = vld [vmem:[%s3] sm:$0xff]
      %v103 = vld [vmem:[%s3 + $0x8] sm:$0xff]
      %v104 = vmax.f32 %v102, 1e-24
      %v105 = vmax.f32 %v103, 1e-24
      %v106 = vrsqrt.pop %v104
      %v107 = vrsqrt.pop %v105
      %108 = vst.msk [vmem:[%s3] sm:$0xff] %vm72, %v106
      %109 = vst.msk [vmem:[%s3 + $0x8] sm:$0xff] %vm72, %v107
    $region25: #{tpu_custom_call.1} parent=1 // pred_fallthru
      _
    // Predicated region
    $region26: #{tpu_custom_call.1} parent=1 // pred_check
      _
    $region27: #{tpu_custom_call.1} parent=1 // pred_check_branch
      %111 = sbr.rel (0) target = $region29
    $region28: #{tpu_custom_call.1} parent=1 // pred_region
      _
    $region29: #{tpu_custom_call.1} parent=1 // pred_fallthru
      _
    // Predicated region
    $region30: #{tpu_custom_call.1} parent=1 // pred_check
      _
    $region31: #{tpu_custom_call.1} parent=1 // pred_check_branch
      %113 = sbr.rel (0) target = $region33
    $region32: #{tpu_custom_call.1} parent=1 // pred_region
      _
    $region33: #{tpu_custom_call.1} parent=1 // pred_fallthru
      _
    // Predicated region
    $region34: #{tpu_custom_call.1} parent=1 // pred_check
      _
    $region35: #{tpu_custom_call.1} parent=1 // pred_check_branch
      %115 = sbr.rel (0) target = $region37
    $region36: #{tpu_custom_call.1} parent=1 // pred_region
      _
    $region37: #{tpu_custom_call.1} parent=1 // pred_fallthru
      _
    // Predicated region
    $region38: #{tpu_custom_call.1} parent=1 // pred_check
      _
    $region39: #{tpu_custom_call.1} parent=1 // pred_check_branch
      %117 = sbr.rel (0) target = $region41
    $region40: #{tpu_custom_call.1} parent=1 // pred_region
      _
    $region41: #{tpu_custom_call.1} parent=1 // pred_fallthru
      _
    %118 = vsyncpa [#allocation3], 1
    %119 = vsyncpa [#allocation5], 1

</llo_original>
